<compile_context>
chip_gen: v7x
topology: tpu7x:2x2x1
jax: 0.10.0
libtpu: 0.0.40
codegen_flags: <defaults>
</compile_context>

<pallas_src>
import functools

import jax
import jax.numpy as jnp
from jax import lax
from jax.experimental import pallas as pl
from jax.experimental.pallas import tpu as pltpu


def _round_up(x, m):
    return ((x + m - 1) // m) * m


# ----------------------------------------------------------------------------
# Position-wise feed-forward (stand-in per decoder layer), optional fused
# final LayerNorm in the epilogue of the reduction over d_ff.
#   grid = (row_tiles, dff_tiles); dff is the reduction axis (last, "arbitrary")
# ----------------------------------------------------------------------------
def _make_ffn_kernel(apply_ln, d_valid, eps):
    def kernel(*refs):
        if apply_ln:
            (x_ref, w1_ref, b1_ref, w2_ref, b2_ref,
             a_ref, g_ref, o_ref, acc_ref) = refs
        else:
            x_ref, w1_ref, b1_ref, w2_ref, b2_ref, o_ref, acc_ref = refs

        j = pl.program_id(1)

        @pl.when(j == 0)
        def _():
            acc_ref[...] = jnp.zeros_like(acc_ref)

        # h slab: [tm, tf] = relu(x @ W1[:, slab] + b1[slab])  (f32 accumulation)
        h = jnp.dot(x_ref[...], w1_ref[...], preferred_element_type=jnp.float32)
        h = jnp.maximum(h + b1_ref[...].astype(jnp.float32), 0.0)
        # dropout(p) in eval mode == identity
        acc_ref[...] += jnp.dot(h.astype(w2_ref.dtype), w2_ref[...],
                                preferred_element_type=jnp.float32)

        @pl.when(j == pl.num_programs(1) - 1)
        def _():
            y = acc_ref[...] + b2_ref[...].astype(jnp.float32)
            if apply_ln:
                tm, dp = y.shape
                col = lax.broadcasted_iota(jnp.int32, (tm, dp), 1)
                mask = col < d_valid                      # ignore padded features
                ym = jnp.where(mask, y, 0.0)
                mean = jnp.sum(ym, axis=-1, keepdims=True) / d_valid
                cen = jnp.where(mask, y - mean, 0.0)
                denom = max(d_valid - 1, 1)               # torch .std() is unbiased
                var = jnp.sum(cen * cen, axis=-1, keepdims=True) / denom
                std = jnp.sqrt(var)
                y = (a_ref[...].astype(jnp.float32) * cen / (std + eps)
                     + g_ref[...].astype(jnp.float32))
            o_ref[...] = y.astype(o_ref.dtype)

    return kernel


def _ffn_2d(x2d, w1, b1, w2, b2, *, tm, tf, ln=None):
    """x2d: [rows_p, Dp] (padded, lane-dense). Weights pre-padded to match.

    ln: None, or (a2p [1,Dp], g2p [1,Dp], d_valid, eps) to fuse the final
        LayerNorm into the epilogue of this layer.
    """
    rows_p, dp = x2d.shape
    dff_p = w1.shape[1]
    grid = (rows_p // tm, dff_p // tf)

    itemsize = x2d.dtype.itemsize
    need = (2 * (tm * dp + tm * dp + dp * tf + tf * dp + tf + dp) * itemsize
            + tm * dp * 4          # f32 accumulator scratch
            + tm * tf * 4)         # f32 h intermediate
    vmem_limit = min(max(int(need * 1.5), 32 * 1024 * 1024), 100 * 1024 * 1024)

    in_specs = [
        pl.BlockSpec((tm, dp), lambda i, j: (i, 0)),   # x rows (reused across j)
        pl.BlockSpec((dp, tf), lambda i, j: (0, j)),   # W1 slab
        pl.BlockSpec((1, tf), lambda i, j: (0, j)),    # b1 slab
        pl.BlockSpec((tf, dp), lambda i, j: (j, 0)),   # W2 slab
        pl.BlockSpec((1, dp), lambda i, j: (0, 0)),    # b2 (resident)
    ]
    args = [x2d, w1, b1, w2, b2]

    if ln is None:
        kernel = _make_ffn_kernel(False, 0, 0.0)
    else:
        a2p, g2p, d_valid, eps = ln
        kernel = _make_ffn_kernel(True, d_valid, eps)
        in_specs += [
            pl.BlockSpec((1, dp), lambda i, j: (0, 0)),  # LN scale (resident)
            pl.BlockSpec((1, dp), lambda i, j: (0, 0)),  # LN bias  (resident)
        ]
        args += [a2p, g2p]

    return pl.pallas_call(
        kernel,
        out_shape=jax.ShapeDtypeStruct((rows_p, dp), x2d.dtype),
        grid_spec=pltpu.PrefetchScalarGridSpec(
            num_scalar_prefetch=0,
            grid=grid,
            in_specs=in_specs,
            out_specs=pl.BlockSpec((tm, dp), lambda i, j: (i, 0)),
            scratch_shapes=[pltpu.VMEM((tm, dp), jnp.float32)],
        ),
        compiler_params=pltpu.CompilerParams(
            dimension_semantics=("parallel", "arbitrary"),
            vmem_limit_bytes=vmem_limit,
        ),
    )(*args)


# ----------------------------------------------------------------------------
# Standalone LayerNorm (only used when there are zero layers)
# ----------------------------------------------------------------------------
def _layernorm_kernel(x_ref, a_ref, b_ref, o_ref, *, d_valid, eps):
    x = x_ref[...].astype(jnp.float32)
    tm, dp = x.shape
    col = lax.broadcasted_iota(jnp.int32, (tm, dp), 1)
    mask = col < d_valid

    xm = jnp.where(mask, x, 0.0)
    mean = jnp.sum(xm, axis=-1, keepdims=True) / d_valid
    cen = jnp.where(mask, x - mean, 0.0)
    denom = max(d_valid - 1, 1)                       # torch .std() is unbiased
    var = jnp.sum(cen * cen, axis=-1, keepdims=True) / denom
    std = jnp.sqrt(var)
    y = (a_ref[...].astype(jnp.float32) * cen / (std + eps)
         + b_ref[...].astype(jnp.float32))
    o_ref[...] = y.astype(o_ref.dtype)


def _layernorm_2d(x2d, a2, b2, *, tm, d_valid, eps):
    rows_p, dp = x2d.shape
    kernel = functools.partial(_layernorm_kernel, d_valid=d_valid, eps=eps)
    return pl.pallas_call(
        kernel,
        out_shape=jax.ShapeDtypeStruct((rows_p, dp), x2d.dtype),
        grid_spec=pltpu.PrefetchScalarGridSpec(
            num_scalar_prefetch=0,
            grid=(rows_p // tm,),
            in_specs=[
                pl.BlockSpec((tm, dp), lambda i: (i, 0)),
                pl.BlockSpec((1, dp), lambda i: (0, 0)),
                pl.BlockSpec((1, dp), lambda i: (0, 0)),
            ],
            out_specs=pl.BlockSpec((tm, dp), lambda i: (i, 0)),
        ),
        compiler_params=pltpu.CompilerParams(
            dimension_semantics=("parallel",)),
    )(x2d, a2, b2)


# ----------------------------------------------------------------------------
# Decoder forward: N layers + final LayerNorm (fused into last layer)
# ----------------------------------------------------------------------------
@functools.partial(jax.jit, static_argnames=("tm", "tf", "eps"))
def decoder_forward(x, layer_params, ln_scale, ln_bias,
                    memory=None, src_mask=None, tgt_mask=None,
                    *, tm=256, tf=512, eps=1e-6):
    """x: [B, S, d_model] -> [B, S, d_model].

    layer_params: list of (w1[d_model,d_ff], b1[d_ff], w2[d_ff,d_model], b2[d_model]).
    memory/src_mask/tgt_mask: unused (generic DecoderLayer not specified).
    """
    del memory, src_mask, tgt_mask
    assert tm % 8 == 0 and tf % 128 == 0

    B, S, d_model = x.shape
    n_tok = B * S
    dp = _round_up(d_model, 128)                         # lane-dense feature dim
    tm_eff = min(tm, _round_up(n_tok, 8))                # clamp tile for tiny inputs
    rows_p = _round_up(n_tok, tm_eff)                    # cdiv-style padded rows

    x2d = x.reshape(n_tok, d_model)
    x2d = jnp.pad(x2d, ((0, rows_p - n_tok), (0, dp - d_model)))

    a2p = jnp.pad(ln_scale.reshape(1, -1), ((0, 0), (0, dp - d_model)),
                  constant_values=1.0)
    g2p = jnp.pad(ln_bias.reshape(1, -1), ((0, 0), (0, dp - d_model)))

    n_layers = len(layer_params)
    for li, (w1, b1, w2, b2) in enumerate(layer_params):
        d_ff = w1.shape[1]
        dff0 = _round_up(d_ff, 128)
        tf_eff = min(tf, dff0)
        dff_p = _round_up(d_ff, tf_eff)                  # divisible by the slab size
        w1p = jnp.pad(w1, ((0, dp - d_model), (0, dff_p - d_ff)))
        b1p = jnp.pad(b1.reshape(1, -1), ((0, 0), (0, dff_p - d_ff)))
        w2p = jnp.pad(w2, ((0, dff_p - d_ff), (0, dp - d_model)))
        b2p = jnp.pad(b2.reshape(1, -1), ((0, 0), (0, dp - d_model)))
        ln = (a2p, g2p, d_model, eps) if li == n_layers - 1 else None
        x2d = _ffn_2d(x2d, w1p, b1p, w2p, b2p, tm=tm_eff, tf=tf_eff, ln=ln)

    if n_layers == 0:
        x2d = _layernorm_2d(x2d, a2p, g2p, tm=tm_eff, d_valid=d_model, eps=eps)

    return x2d[:n_tok, :d_model].reshape(B, S, d_model)


def init_layer_params(key, d_model, d_ff, dtype=jnp.float32):
    """nn.Linear-style init; weights stored transposed (row-major matmul)."""
    k1, k2, k3, k4 = jax.random.split(key, 4)
    bound1 = 1.0 / (d_model ** 0.5)
    bound2 = 1.0 / (d_ff ** 0.5)
    w1 = jax.random.uniform(k1, (d_model, d_ff), dtype, -bound1, bound1)
    b1 = jax.random.uniform(k2, (d_ff,), dtype, -bound1, bound1)
    w2 = jax.random.uniform(k3, (d_ff, d_model), dtype, -bound2, bound2)
    b2 = jax.random.uniform(k4, (d_model,), dtype, -bound2, bound2)
    return w1, b1, w2, b2


if __name__ == "__main__":
    # Small shapes consistent with the module (d_model / d_ff / N scaled down).
    B, S, D_MODEL, D_FF, N_LAYERS = 2, 8, 32, 64, 2
    EPS = 1e-6

    key = jax.random.PRNGKey(0)
    keys = jax.random.split(key, 1 + N_LAYERS)
    x = jax.random.normal(keys[0], (B, S, D_MODEL), dtype=jnp.float32)
    layer_params = [init_layer_params(keys[1 + l], D_MODEL, D_FF)
                    for l in range(N_LAYERS)]
    ln_scale = jnp.ones((D_MODEL,), jnp.float32)
    ln_bias = jnp.zeros((D_MODEL,), jnp.float32)

    out = decoder_forward(x, layer_params, ln_scale, ln_bias)
    out = jax.block_until_ready(out)

    # Pure-JAX reference (PyTorch semantics: eval-mode dropout == identity,
    # LayerNorm with unbiased std and `std + eps` denominator).
    ref = x
    for (w1, b1, w2, b2) in layer_params:
        ref = jnp.maximum(ref @ w1 + b1, 0.0) @ w2 + b2
    mean = ref.mean(-1, keepdims=True)
    std = jnp.std(ref, axis=-1, keepdims=True, ddof=1)
    ref = ln_scale * (ref - mean) / (std + EPS) + ln_bias

    assert out.shape == (B, S, D_MODEL)
    max_err = float(jnp.max(jnp.abs(out - ref)))
    assert jnp.allclose(out, ref, atol=1e-4, rtol=1e-4), max_err

    print("KERNEL_OK")
</pallas_src>

<mosaic_0001>
module attributes {stable_mosaic.version = 11 : i64} {
  func.func @kernel(%arg0: i32, %arg1: i32, %arg2: memref<16x128xf32, #tpu.memory_space<vmem>>, %arg3: memref<128x128xf32, #tpu.memory_space<vmem>>, %arg4: memref<1x128xf32, #tpu.memory_space<vmem>>, %arg5: memref<128x128xf32, #tpu.memory_space<vmem>>, %arg6: memref<1x128xf32, #tpu.memory_space<vmem>>, %arg7: memref<16x128xf32, #tpu.memory_space<vmem>>, %arg8: memref<16x128xf32, #tpu.memory_space<vmem>>) attributes {dimension_semantics = [#tpu.dimension_semantics<parallel>, #tpu.dimension_semantics<arbitrary>], iteration_bounds = array<i64: 1, 1>, scalar_prefetch = 0 : i64, scratch_operands = 1 : i64, tpu.core_type = #tpu.core_type<tc>, window_params = [{transform_indices = @transform_0, window_bounds = array<i64: 16, 128>}, {transform_indices = @transform_1, window_bounds = array<i64: 128, 128>}, {transform_indices = @transform_2, window_bounds = array<i64: 1, 128>}, {transform_indices = @transform_3, window_bounds = array<i64: 128, 128>}, {pipeline_mode = #tpu.pipeline_mode<synchronous>, transform_indices = @transform_4, window_bounds = array<i64: 1, 128>}, {transform_indices = @transform_5, window_bounds = array<i64: 16, 128>}]} {
    %c0_i32 = arith.constant 0 : i32
    %0 = arith.cmpi eq, %arg1, %c0_i32 : i32
    %1 = arith.extui %0 : i1 to i32
    %c0_i32_0 = arith.constant 0 : i32
    %2 = arith.cmpi ne, %1, %c0_i32_0 : i32
    scf.if %2 {
      %cst_16 = arith.constant 0.000000e+00 : f32
      %19 = vector.broadcast %cst_16 : f32 to vector<16x128xf32>
      %c0_17 = arith.constant 0 : index
      %c0_18 = arith.constant 0 : index
      %20 = vector.load %arg8[%c0_17, %c0_18] : memref<16x128xf32, #tpu.memory_space<vmem>>, vector<16x128xf32>
      tpu.vector_store %arg8[%c0_17, %c0_18], %19 {strides = array<i32>} : memref<16x128xf32, #tpu.memory_space<vmem>>, vector<16x128xf32>,
    } else {
    }
    %c0 = arith.constant 0 : index
    %c0_1 = arith.constant 0 : index
    %3 = vector.load %arg2[%c0, %c0_1] : memref<16x128xf32, #tpu.memory_space<vmem>>, vector<16x128xf32>
    %c0_2 = arith.constant 0 : index
    %c0_3 = arith.constant 0 : index
    %4 = vector.load %arg3[%c0_2, %c0_3] : memref<128x128xf32, #tpu.memory_space<vmem>>, vector<128x128xf32>
    %cst = arith.constant dense<0.000000e+00> : vector<16x128xf32>
    %5 = tpu.matmul %3, %4, %cst {dimension_numbers = #tpu.dot_dimension_numbers<[1], [0], [0], [1], [0, 0, 1, 1], [], []>} : vector<16x128xf32>, vector<128x128xf32>, vector<16x128xf32> -> vector<16x128xf32>
    %c0_4 = arith.constant 0 : index
    %c0_5 = arith.constant 0 : index
    %6 = vector.load %arg4[%c0_4, %c0_5] : memref<1x128xf32, #tpu.memory_space<vmem>>, vector<1x128xf32>
    %7 = vector.broadcast %6 : vector<1x128xf32> to vector<16x128xf32>
    %8 = arith.addf %5, %7 : vector<16x128xf32>
    %cst_6 = arith.constant 0.000000e+00 : f32
    %9 = vector.broadcast %cst_6 : f32 to vector<16x128xf32>
    %10 = arith.maximumf %8, %9 : vector<16x128xf32>
    %c0_7 = arith.constant 0 : index
    %c0_8 = arith.constant 0 : index
    %11 = vector.load %arg8[%c0_7, %c0_8] : memref<16x128xf32, #tpu.memory_space<vmem>>, vector<16x128xf32>
    %c0_9 = arith.constant 0 : index
    %c0_10 = arith.constant 0 : index
    %12 = vector.load %arg5[%c0_9, %c0_10] : memref<128x128xf32, #tpu.memory_space<vmem>>, vector<128x128xf32>
    %cst_11 = arith.constant dense<0.000000e+00> : vector<16x128xf32>
    %13 = tpu.matmul %10, %12, %cst_11 {dimension_numbers = #tpu.dot_dimension_numbers<[1], [0], [0], [1], [0, 0, 1, 1], [], []>} : vector<16x128xf32>, vector<128x128xf32>, vector<16x128xf32> -> vector<16x128xf32>
    %14 = arith.addf %11, %13 : vector<16x128xf32>
    %c0_12 = arith.constant 0 : index
    %c0_13 = arith.constant 0 : index
    %15 = vector.load %arg8[%c0_12, %c0_13] : memref<16x128xf32, #tpu.memory_space<vmem>>, vector<16x128xf32>
    tpu.vector_store %arg8[%c0_12, %c0_13], %14 {strides = array<i32>} : memref<16x128xf32, #tpu.memory_space<vmem>>, vector<16x128xf32>,
    %c0_i32_14 = arith.constant 0 : i32
    %16 = arith.cmpi eq, %arg1, %c0_i32_14 : i32
    %17 = arith.extui %16 : i1 to i32
    %c0_i32_15 = arith.constant 0 : i32
    %18 = arith.cmpi ne, %17, %c0_i32_15 : i32
    scf.if %18 {
      %c0_16 = arith.constant 0 : index
      %c0_17 = arith.constant 0 : index
      %19 = vector.load %arg8[%c0_16, %c0_17] : memref<16x128xf32, #tpu.memory_space<vmem>>, vector<16x128xf32>
      %c0_18 = arith.constant 0 : index
      %c0_19 = arith.constant 0 : index
      %20 = vector.load %arg6[%c0_18, %c0_19] : memref<1x128xf32, #tpu.memory_space<vmem>>, vector<1x128xf32>
      %21 = vector.broadcast %20 : vector<1x128xf32> to vector<16x128xf32>
      %22 = arith.addf %19, %21 : vector<16x128xf32>
      %c0_20 = arith.constant 0 : index
      %c0_21 = arith.constant 0 : index
      %23 = vector.load %arg7[%c0_20, %c0_21] : memref<16x128xf32, #tpu.memory_space<vmem>>, vector<16x128xf32>
      tpu.vector_store %arg7[%c0_20, %c0_21], %22 {strides = array<i32>} : memref<16x128xf32, #tpu.memory_space<vmem>>, vector<16x128xf32>,
    } else {
    }
    return
  }
  func.func @transform_0(%arg0: i32, %arg1: i32) -> (i32, i32) {
    %c0_i32 = arith.constant 0 : i32
    %c0_i32_0 = arith.constant 0 : i32
    return %arg0, %c0_i32 : i32, i32
  }
  func.func @transform_1(%arg0: i32, %arg1: i32) -> (i32, i32) {
    %c0_i32 = arith.constant 0 : i32
    %c0_i32_0 = arith.constant 0 : i32
    return %c0_i32, %arg1 : i32, i32
  }
  func.func @transform_2(%arg0: i32, %arg1: i32) -> (i32, i32) {
    %c0_i32 = arith.constant 0 : i32
    %c0_i32_0 = arith.constant 0 : i32
    return %c0_i32, %arg1 : i32, i32
  }
  func.func @transform_3(%arg0: i32, %arg1: i32) -> (i32, i32) {
    %c0_i32 = arith.constant 0 : i32
    %c0_i32_0 = arith.constant 0 : i32
    return %arg1, %c0_i32 : i32, i32
  }
  func.func @transform_4(%arg0: i32, %arg1: i32) -> (i32, i32) {
    %c0_i32 = arith.constant 0 : i32
    %c0_i32_0 = arith.constant 0 : i32
    %c0_i32_1 = arith.constant 0 : i32
    return %c0_i32, %c0_i32_0 : i32, i32
  }
  func.func @transform_5(%arg0: i32, %arg1: i32) -> (i32, i32) {
    %c0_i32 = arith.constant 0 : i32
    %c0_i32_0 = arith.constant 0 : i32
    return %arg0, %c0_i32 : i32, i32
  }
}

module attributes {stable_mosaic.version = 11 : i64} {
  func.func @kernel(%arg0: i32, %arg1: i32, %arg2: memref<16x128xf32, #tpu.memory_space<vmem>>, %arg3: memref<128x128xf32, #tpu.memory_space<vmem>>, %arg4: memref<1x128xf32, #tpu.memory_space<vmem>>, %arg5: memref<128x128xf32, #tpu.memory_space<vmem>>, %arg6: memref<1x128xf32, #tpu.memory_space<vmem>>, %arg7: memref<1x128xf32, #tpu.memory_space<vmem>>, %arg8: memref<1x128xf32, #tpu.memory_space<vmem>>, %arg9: memref<16x128xf32, #tpu.memory_space<vmem>>, %arg10: memref<16x128xf32, #tpu.memory_space<vmem>>) attributes {dimension_semantics = [#tpu.dimension_semantics<parallel>, #tpu.dimension_semantics<arbitrary>], iteration_bounds = array<i64: 1, 1>, scalar_prefetch = 0 : i64, scratch_operands = 1 : i64, tpu.core_type = #tpu.core_type<tc>, window_params = [{transform_indices = @transform_0, window_bounds = array<i64: 16, 128>}, {transform_indices = @transform_1, window_bounds = array<i64: 128, 128>}, {transform_indices = @transform_2, window_bounds = array<i64: 1, 128>}, {transform_indices = @transform_3, window_bounds = array<i64: 128, 128>}, {pipeline_mode = #tpu.pipeline_mode<synchronous>, transform_indices = @transform_4, window_bounds = array<i64: 1, 128>}, {pipeline_mode = #tpu.pipeline_mode<synchronous>, transform_indices = @transform_5, window_bounds = array<i64: 1, 128>}, {pipeline_mode = #tpu.pipeline_mode<synchronous>, transform_indices = @transform_6, window_bounds = array<i64: 1, 128>}, {transform_indices = @transform_7, window_bounds = array<i64: 16, 128>}]} {
    %c0_i32 = arith.constant 0 : i32
    %0 = arith.cmpi eq, %arg1, %c0_i32 : i32
    %1 = arith.extui %0 : i1 to i32
    %c0_i32_0 = arith.constant 0 : i32
    %2 = arith.cmpi ne, %1, %c0_i32_0 : i32
    scf.if %2 {
      %cst_16 = arith.constant 0.000000e+00 : f32
      %19 = vector.broadcast %cst_16 : f32 to vector<16x128xf32>
      %c0_17 = arith.constant 0 : index
      %c0_18 = arith.constant 0 : index
      %20 = vector.load %arg10[%c0_17, %c0_18] : memref<16x128xf32, #tpu.memory_space<vmem>>, vector<16x128xf32>
      tpu.vector_store %arg10[%c0_17, %c0_18], %19 {strides = array<i32>} : memref<16x128xf32, #tpu.memory_space<vmem>>, vector<16x128xf32>,
    } else {
    }
    %c0 = arith.constant 0 : index
    %c0_1 = arith.constant 0 : index
    %3 = vector.load %arg2[%c0, %c0_1] : memref<16x128xf32, #tpu.memory_space<vmem>>, vector<16x128xf32>
    %c0_2 = arith.constant 0 : index
    %c0_3 = arith.constant 0 : index
    %4 = vector.load %arg3[%c0_2, %c0_3] : memref<128x128xf32, #tpu.memory_space<vmem>>, vector<128x128xf32>
    %cst = arith.constant dense<0.000000e+00> : vector<16x128xf32>
    %5 = tpu.matmul %3, %4, %cst {dimension_numbers = #tpu.dot_dimension_numbers<[1], [0], [0], [1], [0, 0, 1, 1], [], []>} : vector<16x128xf32>, vector<128x128xf32>, vector<16x128xf32> -> vector<16x128xf32>
    %c0_4 = arith.constant 0 : index
    %c0_5 = arith.constant 0 : index
    %6 = vector.load %arg4[%c0_4, %c0_5] : memref<1x128xf32, #tpu.memory_space<vmem>>, vector<1x128xf32>
    %7 = vector.broadcast %6 : vector<1x128xf32> to vector<16x128xf32>
    %8 = arith.addf %5, %7 : vector<16x128xf32>
    %cst_6 = arith.constant 0.000000e+00 : f32
    %9 = vector.broadcast %cst_6 : f32 to vector<16x128xf32>
    %10 = arith.maximumf %8, %9 : vector<16x128xf32>
    %c0_7 = arith.constant 0 : index
    %c0_8 = arith.constant 0 : index
    %11 = vector.load %arg10[%c0_7, %c0_8] : memref<16x128xf32, #tpu.memory_space<vmem>>, vector<16x128xf32>
    %c0_9 = arith.constant 0 : index
    %c0_10 = arith.constant 0 : index
    %12 = vector.load %arg5[%c0_9, %c0_10] : memref<128x128xf32, #tpu.memory_space<vmem>>, vector<128x128xf32>
    %cst_11 = arith.constant dense<0.000000e+00> : vector<16x128xf32>
    %13 = tpu.matmul %10, %12, %cst_11 {dimension_numbers = #tpu.dot_dimension_numbers<[1], [0], [0], [1], [0, 0, 1, 1], [], []>} : vector<16x128xf32>, vector<128x128xf32>, vector<16x128xf32> -> vector<16x128xf32>
    %14 = arith.addf %11, %13 : vector<16x128xf32>
    %c0_12 = arith.constant 0 : index
    %c0_13 = arith.constant 0 : index
    %15 = vector.load %arg10[%c0_12, %c0_13] : memref<16x128xf32, #tpu.memory_space<vmem>>, vector<16x128xf32>
    tpu.vector_store %arg10[%c0_12, %c0_13], %14 {strides = array<i32>} : memref<16x128xf32, #tpu.memory_space<vmem>>, vector<16x128xf32>,
    %c0_i32_14 = arith.constant 0 : i32
    %16 = arith.cmpi eq, %arg1, %c0_i32_14 : i32
    %17 = arith.extui %16 : i1 to i32
    %c0_i32_15 = arith.constant 0 : i32
    %18 = arith.cmpi ne, %17, %c0_i32_15 : i32
    scf.if %18 {
      %c0_16 = arith.constant 0 : index
      %c0_17 = arith.constant 0 : index
      %19 = vector.load %arg10[%c0_16, %c0_17] : memref<16x128xf32, #tpu.memory_space<vmem>>, vector<16x128xf32>
      %c0_18 = arith.constant 0 : index
      %c0_19 = arith.constant 0 : index
      %20 = vector.load %arg6[%c0_18, %c0_19] : memref<1x128xf32, #tpu.memory_space<vmem>>, vector<1x128xf32>
      %21 = vector.broadcast %20 : vector<1x128xf32> to vector<16x128xf32>
      %22 = arith.addf %19, %21 : vector<16x128xf32>
      %23 = tpu.iota {dimensions = array<i32: 1>} : vector<16x128xi32>
      %c32_i32 = arith.constant 32 : i32
      %24 = vector.broadcast %c32_i32 : i32 to vector<16x128xi32>
      %25 = arith.cmpi slt, %23, %24 : vector<16x128xi32>
      %cst_20 = arith.constant 0.000000e+00 : f32
      %26 = vector.broadcast %cst_20 : f32 to vector<16x128xf32>
      %27 = arith.select %25, %22, %26 : vector<16x128xi1>, vector<16x128xf32>
      %cst_21 = arith.constant dense<0.000000e+00> : vector<16xf32>
      %28 = vector.multi_reduction <add>, %27, %cst_21 [1] : vector<16x128xf32> to vector<16xf32>
      %29 = vector.shape_cast %28 : vector<16xf32> to vector<16x1xf32>
      %cst_22 = arith.constant 3.200000e+01 : f32
      %30 = vector.broadcast %cst_22 : f32 to vector<16x1xf32>
      %31 = arith.divf %29, %30 : vector<16x1xf32>
      %32 = vector.broadcast %31 : vector<16x1xf32> to vector<16x128xf32>
      %33 = arith.subf %22, %32 : vector<16x128xf32>
      %cst_23 = arith.constant 0.000000e+00 : f32
      %34 = vector.broadcast %cst_23 : f32 to vector<16x128xf32>
      %35 = arith.select %25, %33, %34 : vector<16x128xi1>, vector<16x128xf32>
      %36 = arith.mulf %35, %35 : vector<16x128xf32>
      %cst_24 = arith.constant dense<0.000000e+00> : vector<16xf32>
      %37 = vector.multi_reduction <add>, %36, %cst_24 [1] : vector<16x128xf32> to vector<16xf32>
      %38 = vector.shape_cast %37 : vector<16xf32> to vector<16x1xf32>
      %cst_25 = arith.constant 3.100000e+01 : f32
      %39 = vector.broadcast %cst_25 : f32 to vector<16x1xf32>
      %40 = arith.divf %38, %39 : vector<16x1xf32>
      %41 = math.sqrt %40 : vector<16x1xf32>
      %c0_26 = arith.constant 0 : index
      %c0_27 = arith.constant 0 : index
      %42 = vector.load %arg7[%c0_26, %c0_27] : memref<1x128xf32, #tpu.memory_space<vmem>>, vector<1x128xf32>
      %43 = vector.broadcast %42 : vector<1x128xf32> to vector<16x128xf32>
      %44 = arith.mulf %43, %35 : vector<16x128xf32>
      %cst_28 = arith.constant 9.99999997E-7 : f32
      %45 = vector.broadcast %cst_28 : f32 to vector<16x1xf32>
      %46 = arith.addf %41, %45 : vector<16x1xf32>
      %47 = vector.broadcast %46 : vector<16x1xf32> to vector<16x128xf32>
      %48 = arith.divf %44, %47 : vector<16x128xf32>
      %c0_29 = arith.constant 0 : index
      %c0_30 = arith.constant 0 : index
      %49 = vector.load %arg8[%c0_29, %c0_30] : memref<1x128xf32, #tpu.memory_space<vmem>>, vector<1x128xf32>
      %50 = vector.broadcast %49 : vector<1x128xf32> to vector<16x128xf32>
      %51 = arith.addf %48, %50 : vector<16x128xf32>
      %c0_31 = arith.constant 0 : index
      %c0_32 = arith.constant 0 : index
      %52 = vector.load %arg9[%c0_31, %c0_32] : memref<16x128xf32, #tpu.memory_space<vmem>>, vector<16x128xf32>
      tpu.vector_store %arg9[%c0_31, %c0_32], %51 {strides = array<i32>} : memref<16x128xf32, #tpu.memory_space<vmem>>, vector<16x128xf32>,
    } else {
    }
    return
  }
  func.func @transform_0(%arg0: i32, %arg1: i32) -> (i32, i32) {
    %c0_i32 = arith.constant 0 : i32
    %c0_i32_0 = arith.constant 0 : i32
    return %arg0, %c0_i32 : i32, i32
  }
  func.func @transform_1(%arg0: i32, %arg1: i32) -> (i32, i32) {
    %c0_i32 = arith.constant 0 : i32
    %c0_i32_0 = arith.constant 0 : i32
    return %c0_i32, %arg1 : i32, i32
  }
  func.func @transform_2(%arg0: i32, %arg1: i32) -> (i32, i32) {
    %c0_i32 = arith.constant 0 : i32
    %c0_i32_0 = arith.constant 0 : i32
    return %c0_i32, %arg1 : i32, i32
  }
  func.func @transform_3(%arg0: i32, %arg1: i32) -> (i32, i32) {
    %c0_i32 = arith.constant 0 : i32
    %c0_i32_0 = arith.constant 0 : i32
    return %arg1, %c0_i32 : i32, i32
  }
  func.func @transform_4(%arg0: i32, %arg1: i32) -> (i32, i32) {
    %c0_i32 = arith.constant 0 : i32
    %c0_i32_0 = arith.constant 0 : i32
    %c0_i32_1 = arith.constant 0 : i32
    return %c0_i32, %c0_i32_0 : i32, i32
  }
  func.func @transform_5(%arg0: i32, %arg1: i32) -> (i32, i32) {
    %c0_i32 = arith.constant 0 : i32
    %c0_i32_0 = arith.constant 0 : i32
    %c0_i32_1 = arith.constant 0 : i32
    return %c0_i32, %c0_i32_0 : i32, i32
  }
  func.func @transform_6(%arg0: i32, %arg1: i32) -> (i32, i32) {
    %c0_i32 = arith.constant 0 : i32
    %c0_i32_0 = arith.constant 0 : i32
    %c0_i32_1 = arith.constant 0 : i32
    return %c0_i32, %c0_i32_0 : i32, i32
  }
  func.func @transform_7(%arg0: i32, %arg1: i32) -> (i32, i32) {
    %c0_i32 = arith.constant 0 : i32
    %c0_i32_0 = arith.constant 0 : i32
    return %arg0, %c0_i32 : i32, i32
  }
}

</mosaic_0001>

<llo_original>
// kernel: decoder_forward.2
$region0: #{decoder_forward.2}
  #allocation0 [shape = 'u32[]', space=smem, size = 0x4, offset = 0x4, fixed_abs, tag = 'smem constant byte address 0x4 - core index']
  #allocation1 [shape = 'u32[144,128]{1,0:T(1,128)}', space=vmem, size = 0x12000, scoped, tag = 'internal scratch']
  #allocation2 [shape = 'f32[16,128]{1,0:T(8,128)}', space=vmem, size = 0x2000, scoped, tag = 'scratch operand']
  %s0 = inlined_call_operand.vmem [shape: f32[16,128], index: 0, kind: input, shape index: {}]
  %s1 = inlined_call_operand.vmem [shape: f32[128,128], index: 1, kind: input, shape index: {}]
  %s2 = inlined_call_operand.vmem [shape: f32[1,128], index: 2, kind: input, shape index: {}]
  %s3 = inlined_call_operand.vmem [shape: f32[128,128], index: 3, kind: input, shape index: {}]
  %s4 = inlined_call_operand.vmem [shape: f32[1,128], index: 4, kind: input, shape index: {}]
  %s5 = inlined_call_operand.vmem [shape: f32[16,128], index: 5, kind: output, shape index: {}]
  %s6 = sld [smem:[#allocation0]]
  $region38: #{decoder_forward.2} parent=0
    _
  %s8 = ssub.s32 1, %s6
  %s9 = scalar_select 0, %s8, %s6
  // Predicated region
  $region2: #{decoder_forward.2} parent=0 // pred_check
    _
  $region3: #{decoder_forward.2} parent=0 // pred_check_branch
    %11 = sbr.rel (0) target = $region5
  $region4: #{decoder_forward.2} parent=0 // pred_region
    _
  $region5: #{decoder_forward.2} parent=0 // pred_fallthru
    _
  // Predicated region
  $region6: #{decoder_forward.2} parent=0 // pred_check
    _
  $region7: #{decoder_forward.2} parent=0 // pred_check_branch
    %13 = sbr.rel (0) target = $region9
  $region8: #{decoder_forward.2} parent=0 // pred_region
    _
  $region9: #{decoder_forward.2} parent=0 // pred_fallthru
    _
  // Predicated region
  $region10: #{decoder_forward.2} parent=0 // pred_check
    _
  $region11: #{decoder_forward.2} parent=0 // pred_check_branch
    %15 = sbr.rel (0) target = $region13
  $region12: #{decoder_forward.2} parent=0 // pred_region
    _
  $region13: #{decoder_forward.2} parent=0 // pred_fallthru
    _
  // Predicated region
  $region14: #{decoder_forward.2} parent=0 // pred_check
    _
  $region15: #{decoder_forward.2} parent=0 // pred_check_branch
    %17 = sbr.rel (0) target = $region17
  $region16: #{decoder_forward.2} parent=0 // pred_region
    _
  $region17: #{decoder_forward.2} parent=0 // pred_fallthru
    _
  // Predicated region
  $region18: #{decoder_forward.2} parent=0 // pred_check
    _
  $region19: #{decoder_forward.2} parent=0 // pred_check_branch
    %19 = sbr.rel (0) target = $region21
  $region20: #{decoder_forward.2} parent=0 // pred_region
    _
  $region21: #{decoder_forward.2} parent=0 // pred_fallthru
    _
  %p20 = scmp.eq.s32.totalorder 0, 0
  // Predicated region
  $region22: #{decoder_forward.2} parent=0 // pred_check
    %p21 = pneg %p20
  $region23: #{decoder_forward.2} parent=0 // pred_check_branch
    %23 = sbr.rel (%p21) target = $region25
  $region24: #{decoder_forward.2} parent=0 // pred_region
    %24 = vst [vmem:[#allocation2] sm:$0xff] 0.0
    %25 = vst [vmem:[#allocation2 + $0x8] sm:$0xff] 0.0
  $region25: #{decoder_forward.2} parent=0 // pred_fallthru
    _
  %v26 = vld [vmem:[%s0] sm:$0xff]
  %v27 = vld [vmem:[%s0 + $0x8] sm:$0xff]
  %v28 = vld [vmem:[%s1] sm:$0xff]
  %v29 = vld [vmem:[%s1 + $0x8] sm:$0xff]
  %v30 = vld [vmem:[%s1 + $0x10] sm:$0xff]
  %v31 = vld [vmem:[%s1 + $0x18] sm:$0xff]
  %v32 = vld [vmem:[%s1 + $0x20] sm:$0xff]
  %v33 = vld [vmem:[%s1 + $0x28] sm:$0xff]
  %v34 = vld [vmem:[%s1 + $0x30] sm:$0xff]
  %v35 = vld [vmem:[%s1 + $0x38] sm:$0xff]
  %v36 = vld [vmem:[%s1 + $0x40] sm:$0xff]
  %v37 = vld [vmem:[%s1 + $0x48] sm:$0xff]
  %v38 = vld [vmem:[%s1 + $0x50] sm:$0xff]
  %v39 = vld [vmem:[%s1 + $0x58] sm:$0xff]
  %v40 = vld [vmem:[%s1 + $0x60] sm:$0xff]
  %v41 = vld [vmem:[%s1 + $0x68] sm:$0xff]
  %v42 = vld [vmem:[%s1 + $0x70] sm:$0xff]
  %v43 = vld [vmem:[%s1 + $0x78] sm:$0xff]
  %v44 = vld [vmem:[%s2] sm:$0x1]
  %v46 = vlaneseq
  %v47 = vshrl.u32 %v46, 7
  %v48 = vsub.s32 0, %v47
  %v49 = vrot.slane %v44, %v48
  %51 = vmatprep.subr.mxu0 0.0
  %52 = vmatpush1.msra.mxu0 %v28
  %53 = vmatprep.subr.mxu0 0.0
  %54 = vmatpush1.msra.mxu0 %v29
  %55 = vmatprep.subr.mxu0 0.0
  %56 = vmatpush1.msra.mxu0 %v30
  %57 = vmatprep.subr.mxu0 0.0
  %58 = vmatpush1.msra.mxu0 %v31
  %59 = vmatprep.subr.mxu0 0.0
  %60 = vmatpush1.msra.mxu0 %v32
  %61 = vmatprep.subr.mxu0 0.0
  %62 = vmatpush1.msra.mxu0 %v33
  %63 = vmatprep.subr.mxu0 0.0
  %64 = vmatpush1.msra.mxu0 %v34
  %65 = vmatprep.subr.mxu0 0.0
  %66 = vmatpush1.msra.mxu0 %v35
  %67 = vmatprep.subr.mxu0 0.0
  %68 = vmatpush1.msra.mxu0 %v36
  %69 = vmatprep.subr.mxu0 0.0
  %70 = vmatpush1.msra.mxu0 %v37
  %71 = vmatprep.subr.mxu0 0.0
  %72 = vmatpush1.msra.mxu0 %v38
  %73 = vmatprep.subr.mxu0 0.0
  %74 = vmatpush1.msra.mxu0 %v39
  %75 = vmatprep.subr.mxu0 0.0
  %76 = vmatpush1.msra.mxu0 %v40
  %77 = vmatprep.subr.mxu0 0.0
  %78 = vmatpush1.msra.mxu0 %v41
  %79 = vmatprep.subr.mxu0 0.0
  %80 = vmatpush1.msra.mxu0 %v42
  %81 = vmatprep.subr.mxu0 0.0
  %82 = vmatpush1.msra.mxu0 %v43
  %83 = vmatprep.subr.mxu0 0.0
  %84 = vmatpush1.msra.mxu0 0.0
  %85 = vmatprep.subr.mxu0 0.0
  %86 = vmatpush1.msra.mxu0 0.0
  %87 = vmatprep.subr.mxu0 0.0
  %88 = vmatpush1.msra.mxu0 0.0
  %89 = vmatprep.subr.mxu0 0.0
  %90 = vmatpush1.msra.mxu0 0.0
  %91 = vmatprep.subr.mxu0 0.0
  %92 = vmatpush1.msra.mxu0 0.0
  %93 = vmatprep.subr.mxu0 0.0
  %94 = vmatpush1.msra.mxu0 0.0
  %95 = vmatprep.subr.mxu0 0.0
  %96 = vmatpush1.msra.mxu0 0.0
  %97 = vmatprep.subr.mxu0 0.0
  %98 = vmatpush1.msra.mxu0 0.0
  %99 = vmatprep.subr.mxu0 0.0
  %100 = vmatpush1.msra.mxu0 0.0
  %101 = vmatprep.subr.mxu0 0.0
  %102 = vmatpush1.msra.mxu0 0.0
  %103 = vmatprep.subr.mxu0 0.0
  %104 = vmatpush1.msra.mxu0 0.0
  %105 = vmatprep.subr.mxu0 0.0
  %106 = vmatpush1.msra.mxu0 0.0
  %107 = vmatprep.subr.mxu0 0.0
  %108 = vmatpush1.msra.mxu0 0.0
  %109 = vmatprep.subr.mxu0 0.0
  %110 = vmatpush1.msra.mxu0 0.0
  %111 = vmatprep.subr.mxu0 0.0
  %112 = vmatpush1.msra.mxu0 0.0
  %113 = vmatprep.subr.mxu0 0.0
  %114 = vmatpush1.msra.mxu0 0.0
  %115 = vmatprep.mubr.f32.mxu0 0.0
  %116 = vmatmul.mubr.f32.gmra.mrb[0].mxu0 %v26
  %v117 = vpop.f32.mrb[0].mxu0
  %v118 = vadd.f32 %v49, %v117
  %v119 = vpop.f32.mrb[0].mxu0
  %120 = vmatprep.mubr.f32.mxu0 0.0
  %121 = vmatmul.mubr.f32.gmra.mrb[0].mxu0 %v27
  %v122 = vpop.f32.mrb[0].mxu0
  %v123 = vadd.f32 %v49, %v122
  %v124 = vpop.f32.mrb[0].mxu0
  %125 = vdwg.mxu0
  %v126 = vmax.f32 %v118, 0.0
  %v127 = vmax.f32 %v123, 0.0
  %v128 = vld [vmem:[#allocation2] sm:$0xff]
  %v129 = vld [vmem:[#allocation2 + $0x8] sm:$0xff]
  %v130 = vld [vmem:[%s3] sm:$0xff]
  %v131 = vld [vmem:[%s3 + $0x8] sm:$0xff]
  %v132 = vld [vmem:[%s3 + $0x10] sm:$0xff]
  %v133 = vld [vmem:[%s3 + $0x18] sm:$0xff]
  %v134 = vld [vmem:[%s3 + $0x20] sm:$0xff]
  %v135 = vld [vmem:[%s3 + $0x28] sm:$0xff]
  %v136 = vld [vmem:[%s3 + $0x30] sm:$0xff]
  %v137 = vld [vmem:[%s3 + $0x38] sm:$0xff]
  %v138 = vld [vmem:[%s3 + $0x40] sm:$0xff]
  %v139 = vld [vmem:[%s3 + $0x48] sm:$0xff]
  %v140 = vld [vmem:[%s3 + $0x50] sm:$0xff]
  %v141 = vld [vmem:[%s3 + $0x58] sm:$0xff]
  %v142 = vld [vmem:[%s3 + $0x60] sm:$0xff]
  %v143 = vld [vmem:[%s3 + $0x68] sm:$0xff]
  %v144 = vld [vmem:[%s3 + $0x70] sm:$0xff]
  %v145 = vld [vmem:[%s3 + $0x78] sm:$0xff]
  %146 = vmatprep.subr.mxu0 0.0
  %147 = vmatpush1.msra.mxu0 %v130
  %148 = vmatprep.subr.mxu0 0.0
  %149 = vmatpush1.msra.mxu0 %v131
  %150 = vmatprep.subr.mxu0 0.0
  %151 = vmatpush1.msra.mxu0 %v132
  %152 = vmatprep.subr.mxu0 0.0
  %153 = vmatpush1.msra.mxu0 %v133
  %154 = vmatprep.subr.mxu0 0.0
  %155 = vmatpush1.msra.mxu0 %v134
  %156 = vmatprep.subr.mxu0 0.0
  %157 = vmatpush1.msra.mxu0 %v135
  %158 = vmatprep.subr.mxu0 0.0
  %159 = vmatpush1.msra.mxu0 %v136
  %160 = vmatprep.subr.mxu0 0.0
  %161 = vmatpush1.msra.mxu0 %v137
  %162 = vmatprep.subr.mxu0 0.0
  %163 = vmatpush1.msra.mxu0 %v138
  %164 = vmatprep.subr.mxu0 0.0
  %165 = vmatpush1.msra.mxu0 %v139
  %166 = vmatprep.subr.mxu0 0.0
  %167 = vmatpush1.msra.mxu0 %v140
  %168 = vmatprep.subr.mxu0 0.0
  %169 = vmatpush1.msra.mxu0 %v141
  %170 = vmatprep.subr.mxu0 0.0
  %171 = vmatpush1.msra.mxu0 %v142
  %172 = vmatprep.subr.mxu0 0.0
  %173 = vmatpush1.msra.mxu0 %v143
  %174 = vmatprep.subr.mxu0 0.0
  %175 = vmatpush1.msra.mxu0 %v144
  %176 = vmatprep.subr.mxu0 0.0
  %177 = vmatpush1.msra.mxu0 %v145
  %178 = vmatprep.subr.mxu0 0.0
  %179 = vmatpush1.msra.mxu0 0.0
  %180 = vmatprep.subr.mxu0 0.0
  %181 = vmatpush1.msra.mxu0 0.0
  %182 = vmatprep.subr.mxu0 0.0
  %183 = vmatpush1.msra.mxu0 0.0
  %184 = vmatprep.subr.mxu0 0.0
  %185 = vmatpush1.msra.mxu0 0.0
  %186 = vmatprep.subr.mxu0 0.0
  %187 = vmatpush1.msra.mxu0 0.0
  %188 = vmatprep.subr.mxu0 0.0
  %189 = vmatpush1.msra.mxu0 0.0
  %190 = vmatprep.subr.mxu0 0.0
  %191 = vmatpush1.msra.mxu0 0.0
  %192 = vmatprep.subr.mxu0 0.0
  %193 = vmatpush1.msra.mxu0 0.0
  %194 = vmatprep.subr.mxu0 0.0
  %195 = vmatpush1.msra.mxu0 0.0
  %196 = vmatprep.subr.mxu0 0.0
  %197 = vmatpush1.msra.mxu0 0.0
  %198 = vmatprep.subr.mxu0 0.0
  %199 = vmatpush1.msra.mxu0 0.0
  %200 = vmatprep.subr.mxu0 0.0
  %201 = vmatpush1.msra.mxu0 0.0
  %202 = vmatprep.subr.mxu0 0.0
  %203 = vmatpush1.msra.mxu0 0.0
  %204 = vmatprep.subr.mxu0 0.0
  %205 = vmatpush1.msra.mxu0 0.0
  %206 = vmatprep.subr.mxu0 0.0
  %207 = vmatpush1.msra.mxu0 0.0
  %208 = vmatprep.subr.mxu0 0.0
  %209 = vmatpush1.msra.mxu0 0.0
  %210 = vmatprep.mubr.f32.mxu0 0.0
  %211 = vmatmul.mubr.f32.gmra.mrb[0].mxu0 %v126
  %v212 = vpop.f32.mrb[0].mxu0
  %v213 = vadd.f32 0.0, %v212
  %v214 = vpop.f32.mrb[0].mxu0
  %215 = vmatprep.mubr.f32.mxu0 0.0
  %216 = vmatmul.mubr.f32.gmra.mrb[0].mxu0 %v127
  %v217 = vpop.f32.mrb[0].mxu0
  %v218 = vadd.f32 0.0, %v217
  %v219 = vpop.f32.mrb[0].mxu0
  %220 = vdwg.mxu0
  %v221 = vadd.f32 %v128, %v213
  %v222 = vadd.f32 %v129, %v218
  %223 = vst [vmem:[#allocation2] sm:$0xff] %v221
  %224 = vst [vmem:[#allocation2 + $0x8] sm:$0xff] %v222
  // Predicated region
  $region26: #{decoder_forward.2} parent=0 // pred_check
    %p225 = pneg %p20
  $region27: #{decoder_forward.2} parent=0 // pred_check_branch
    %227 = sbr.rel (%p225) target = $region29
  $region28: #{decoder_forward.2} parent=0 // pred_region
    %v228 = vld [vmem:[#allocation2] sm:$0xff]
    %v229 = vld [vmem:[#allocation2 + $0x8] sm:$0xff]
    %v230 = vld [vmem:[%s4] sm:$0x1]
    %v232 = vlaneseq
    %v233 = vshrl.u32 %v232, 7
    %v234 = vsub.s32 0, %v233
    %v235 = vrot.slane %v230, %v234
    %v237 = vadd.f32 %v228, %v235
    %v238 = vadd.f32 %v229, %v235
    %239 = vst [vmem:[%s5] sm:$0xff] %v237
    %240 = vst [vmem:[%s5 + $0x8] sm:$0xff] %v238
  $region29: #{decoder_forward.2} parent=0 // pred_fallthru
    _
  // Predicated region
  $region30: #{decoder_forward.2} parent=0 // pred_check
    _
  $region31: #{decoder_forward.2} parent=0 // pred_check_branch
    %242 = sbr.rel (0) target = $region33
  $region32: #{decoder_forward.2} parent=0 // pred_region
    _
  $region33: #{decoder_forward.2} parent=0 // pred_fallthru
    _
  // Predicated region
  $region34: #{decoder_forward.2} parent=0 // pred_check
    _
  $region35: #{decoder_forward.2} parent=0 // pred_check_branch
    %244 = sbr.rel (0) target = $region37
  $region36: #{decoder_forward.2} parent=0 // pred_region
    _
  $region37: #{decoder_forward.2} parent=0 // pred_fallthru
    _

// kernel: decoder_forward.3
$region0: #{decoder_forward.3}
  #allocation0 [shape = 'u32[]', space=smem, size = 0x4, offset = 0x4, fixed_abs, tag = 'smem constant byte address 0x4 - core index']
  #allocation1 [shape = 'u32[144,128]{1,0:T(1,128)}', space=vmem, size = 0x12000, scoped, tag = 'internal scratch']
  #allocation2 [shape = 'f32[16,128]{1,0:T(8,128)}', space=vmem, size = 0x2000, scoped, tag = 'scratch operand']
  %s0 = inlined_call_operand.vmem [shape: f32[16,128], index: 0, kind: input, shape index: {}]
  %s1 = inlined_call_operand.vmem [shape: f32[128,128], index: 1, kind: input, shape index: {}]
  %s2 = inlined_call_operand.vmem [shape: f32[1,128], index: 2, kind: input, shape index: {}]
  %s3 = inlined_call_operand.vmem [shape: f32[128,128], index: 3, kind: input, shape index: {}]
  %s4 = inlined_call_operand.vmem [shape: f32[1,128], index: 4, kind: input, shape index: {}]
  %s5 = inlined_call_operand.vmem [shape: f32[1,128], index: 5, kind: input, shape index: {}]
  %s6 = inlined_call_operand.vmem [shape: f32[1,128], index: 6, kind: input, shape index: {}]
  %s7 = inlined_call_operand.vmem [shape: f32[16,128], index: 7, kind: output, shape index: {}]
  %s8 = sld [smem:[#allocation0]]
  $region46: #{decoder_forward.3} parent=0
    _
  %s10 = ssub.s32 1, %s8
  %s11 = scalar_select 0, %s10, %s8
  // Predicated region
  $region2: #{decoder_forward.3} parent=0 // pred_check
    _
  $region3: #{decoder_forward.3} parent=0 // pred_check_branch
    %13 = sbr.rel (0) target = $region5
  $region4: #{decoder_forward.3} parent=0 // pred_region
    _
  $region5: #{decoder_forward.3} parent=0 // pred_fallthru
    _
  // Predicated region
  $region6: #{decoder_forward.3} parent=0 // pred_check
    _
  $region7: #{decoder_forward.3} parent=0 // pred_check_branch
    %15 = sbr.rel (0) target = $region9
  $region8: #{decoder_forward.3} parent=0 // pred_region
    _
  $region9: #{decoder_forward.3} parent=0 // pred_fallthru
    _
  // Predicated region
  $region10: #{decoder_forward.3} parent=0 // pred_check
    _
  $region11: #{decoder_forward.3} parent=0 // pred_check_branch
    %17 = sbr.rel (0) target = $region13
  $region12: #{decoder_forward.3} parent=0 // pred_region
    _
  $region13: #{decoder_forward.3} parent=0 // pred_fallthru
    _
  // Predicated region
  $region14: #{decoder_forward.3} parent=0 // pred_check
    _
  $region15: #{decoder_forward.3} parent=0 // pred_check_branch
    %19 = sbr.rel (0) target = $region17
  $region16: #{decoder_forward.3} parent=0 // pred_region
    _
  $region17: #{decoder_forward.3} parent=0 // pred_fallthru
    _
  // Predicated region
  $region18: #{decoder_forward.3} parent=0 // pred_check
    _
  $region19: #{decoder_forward.3} parent=0 // pred_check_branch
    %21 = sbr.rel (0) target = $region21
  $region20: #{decoder_forward.3} parent=0 // pred_region
    _
  $region21: #{decoder_forward.3} parent=0 // pred_fallthru
    _
  // Predicated region
  $region22: #{decoder_forward.3} parent=0 // pred_check
    _
  $region23: #{decoder_forward.3} parent=0 // pred_check_branch
    %23 = sbr.rel (0) target = $region25
  $region24: #{decoder_forward.3} parent=0 // pred_region
    _
  $region25: #{decoder_forward.3} parent=0 // pred_fallthru
    _
  // Predicated region
  $region26: #{decoder_forward.3} parent=0 // pred_check
    _
  $region27: #{decoder_forward.3} parent=0 // pred_check_branch
    %25 = sbr.rel (0) target = $region29
  $region28: #{decoder_forward.3} parent=0 // pred_region
    _
  $region29: #{decoder_forward.3} parent=0 // pred_fallthru
    _
  %p26 = scmp.eq.s32.totalorder 0, 0
  // Predicated region
  $region30: #{decoder_forward.3} parent=0 // pred_check
    %p27 = pneg %p26
  $region31: #{decoder_forward.3} parent=0 // pred_check_branch
    %29 = sbr.rel (%p27) target = $region33
  $region32: #{decoder_forward.3} parent=0 // pred_region
    %30 = vst [vmem:[#allocation2] sm:$0xff] 0.0
    %31 = vst [vmem:[#allocation2 + $0x8] sm:$0xff] 0.0
  $region33: #{decoder_forward.3} parent=0 // pred_fallthru
    _
  %v32 = vld [vmem:[%s0] sm:$0xff]
  %v33 = vld [vmem:[%s0 + $0x8] sm:$0xff]
  %v34 = vld [vmem:[%s1] sm:$0xff]
  %v35 = vld [vmem:[%s1 + $0x8] sm:$0xff]
  %v36 = vld [vmem:[%s1 + $0x10] sm:$0xff]
  %v37 = vld [vmem:[%s1 + $0x18] sm:$0xff]
  %v38 = vld [vmem:[%s1 + $0x20] sm:$0xff]
  %v39 = vld [vmem:[%s1 + $0x28] sm:$0xff]
  %v40 = vld [vmem:[%s1 + $0x30] sm:$0xff]
  %v41 = vld [vmem:[%s1 + $0x38] sm:$0xff]
  %v42 = vld [vmem:[%s1 + $0x40] sm:$0xff]
  %v43 = vld [vmem:[%s1 + $0x48] sm:$0xff]
  %v44 = vld [vmem:[%s1 + $0x50] sm:$0xff]
  %v45 = vld [vmem:[%s1 + $0x58] sm:$0xff]
  %v46 = vld [vmem:[%s1 + $0x60] sm:$0xff]
  %v47 = vld [vmem:[%s1 + $0x68] sm:$0xff]
  %v48 = vld [vmem:[%s1 + $0x70] sm:$0xff]
  %v49 = vld [vmem:[%s1 + $0x78] sm:$0xff]
  %v50 = vld [vmem:[%s2] sm:$0x1]
  %v52 = vlaneseq
  %v53 = vshrl.u32 %v52, 7
  %v54 = vsub.s32 0, %v53
  %v55 = vrot.slane %v50, %v54
  %57 = vmatprep.subr.mxu0 0.0
  %58 = vmatpush1.msra.mxu0 %v34
  %59 = vmatprep.subr.mxu0 0.0
  %60 = vmatpush1.msra.mxu0 %v35
  %61 = vmatprep.subr.mxu0 0.0
  %62 = vmatpush1.msra.mxu0 %v36
  %63 = vmatprep.subr.mxu0 0.0
  %64 = vmatpush1.msra.mxu0 %v37
  %65 = vmatprep.subr.mxu0 0.0
  %66 = vmatpush1.msra.mxu0 %v38
  %67 = vmatprep.subr.mxu0 0.0
  %68 = vmatpush1.msra.mxu0 %v39
  %69 = vmatprep.subr.mxu0 0.0
  %70 = vmatpush1.msra.mxu0 %v40
  %71 = vmatprep.subr.mxu0 0.0
  %72 = vmatpush1.msra.mxu0 %v41
  %73 = vmatprep.subr.mxu0 0.0
  %74 = vmatpush1.msra.mxu0 %v42
  %75 = vmatprep.subr.mxu0 0.0
  %76 = vmatpush1.msra.mxu0 %v43
  %77 = vmatprep.subr.mxu0 0.0
  %78 = vmatpush1.msra.mxu0 %v44
  %79 = vmatprep.subr.mxu0 0.0
  %80 = vmatpush1.msra.mxu0 %v45
  %81 = vmatprep.subr.mxu0 0.0
  %82 = vmatpush1.msra.mxu0 %v46
  %83 = vmatprep.subr.mxu0 0.0
  %84 = vmatpush1.msra.mxu0 %v47
  %85 = vmatprep.subr.mxu0 0.0
  %86 = vmatpush1.msra.mxu0 %v48
  %87 = vmatprep.subr.mxu0 0.0
  %88 = vmatpush1.msra.mxu0 %v49
  %89 = vmatprep.subr.mxu0 0.0
  %90 = vmatpush1.msra.mxu0 0.0
  %91 = vmatprep.subr.mxu0 0.0
  %92 = vmatpush1.msra.mxu0 0.0
  %93 = vmatprep.subr.mxu0 0.0
  %94 = vmatpush1.msra.mxu0 0.0
  %95 = vmatprep.subr.mxu0 0.0
  %96 = vmatpush1.msra.mxu0 0.0
  %97 = vmatprep.subr.mxu0 0.0
  %98 = vmatpush1.msra.mxu0 0.0
  %99 = vmatprep.subr.mxu0 0.0
  %100 = vmatpush1.msra.mxu0 0.0
  %101 = vmatprep.subr.mxu0 0.0
  %102 = vmatpush1.msra.mxu0 0.0
  %103 = vmatprep.subr.mxu0 0.0
  %104 = vmatpush1.msra.mxu0 0.0
  %105 = vmatprep.subr.mxu0 0.0
  %106 = vmatpush1.msra.mxu0 0.0
  %107 = vmatprep.subr.mxu0 0.0
  %108 = vmatpush1.msra.mxu0 0.0
  %109 = vmatprep.subr.mxu0 0.0
  %110 = vmatpush1.msra.mxu0 0.0
  %111 = vmatprep.subr.mxu0 0.0
  %112 = vmatpush1.msra.mxu0 0.0
  %113 = vmatprep.subr.mxu0 0.0
  %114 = vmatpush1.msra.mxu0 0.0
  %115 = vmatprep.subr.mxu0 0.0
  %116 = vmatpush1.msra.mxu0 0.0
  %117 = vmatprep.subr.mxu0 0.0
  %118 = vmatpush1.msra.mxu0 0.0
  %119 = vmatprep.subr.mxu0 0.0
  %120 = vmatpush1.msra.mxu0 0.0
  %121 = vmatprep.mubr.f32.mxu0 0.0
  %122 = vmatmul.mubr.f32.gmra.mrb[0].mxu0 %v32
  %v123 = vpop.f32.mrb[0].mxu0
  %v124 = vadd.f32 %v55, %v123
  %v125 = vpop.f32.mrb[0].mxu0
  %126 = vmatprep.mubr.f32.mxu0 0.0
  %127 = vmatmul.mubr.f32.gmra.mrb[0].mxu0 %v33
  %v128 = vpop.f32.mrb[0].mxu0
  %v129 = vadd.f32 %v55, %v128
  %v130 = vpop.f32.mrb[0].mxu0
  %131 = vdwg.mxu0
  %v132 = vmax.f32 %v124, 0.0
  %v133 = vmax.f32 %v129, 0.0
  %v134 = vld [vmem:[#allocation2] sm:$0xff]
  %v135 = vld [vmem:[#allocation2 + $0x8] sm:$0xff]
  %v136 = vld [vmem:[%s3] sm:$0xff]
  %v137 = vld [vmem:[%s3 + $0x8] sm:$0xff]
  %v138 = vld [vmem:[%s3 + $0x10] sm:$0xff]
  %v139 = vld [vmem:[%s3 + $0x18] sm:$0xff]
  %v140 = vld [vmem:[%s3 + $0x20] sm:$0xff]
  %v141 = vld [vmem:[%s3 + $0x28] sm:$0xff]
  %v142 = vld [vmem:[%s3 + $0x30] sm:$0xff]
  %v143 = vld [vmem:[%s3 + $0x38] sm:$0xff]
  %v144 = vld [vmem:[%s3 + $0x40] sm:$0xff]
  %v145 = vld [vmem:[%s3 + $0x48] sm:$0xff]
  %v146 = vld [vmem:[%s3 + $0x50] sm:$0xff]
  %v147 = vld [vmem:[%s3 + $0x58] sm:$0xff]
  %v148 = vld [vmem:[%s3 + $0x60] sm:$0xff]
  %v149 = vld [vmem:[%s3 + $0x68] sm:$0xff]
  %v150 = vld [vmem:[%s3 + $0x70] sm:$0xff]
  %v151 = vld [vmem:[%s3 + $0x78] sm:$0xff]
  %152 = vmatprep.subr.mxu0 0.0
  %153 = vmatpush1.msra.mxu0 %v136
  %154 = vmatprep.subr.mxu0 0.0
  %155 = vmatpush1.msra.mxu0 %v137
  %156 = vmatprep.subr.mxu0 0.0
  %157 = vmatpush1.msra.mxu0 %v138
  %158 = vmatprep.subr.mxu0 0.0
  %159 = vmatpush1.msra.mxu0 %v139
  %160 = vmatprep.subr.mxu0 0.0
  %161 = vmatpush1.msra.mxu0 %v140
  %162 = vmatprep.subr.mxu0 0.0
  %163 = vmatpush1.msra.mxu0 %v141
  %164 = vmatprep.subr.mxu0 0.0
  %165 = vmatpush1.msra.mxu0 %v142
  %166 = vmatprep.subr.mxu0 0.0
  %167 = vmatpush1.msra.mxu0 %v143
  %168 = vmatprep.subr.mxu0 0.0
  %169 = vmatpush1.msra.mxu0 %v144
  %170 = vmatprep.subr.mxu0 0.0
  %171 = vmatpush1.msra.mxu0 %v145
  %172 = vmatprep.subr.mxu0 0.0
  %173 = vmatpush1.msra.mxu0 %v146
  %174 = vmatprep.subr.mxu0 0.0
  %175 = vmatpush1.msra.mxu0 %v147
  %176 = vmatprep.subr.mxu0 0.0
  %177 = vmatpush1.msra.mxu0 %v148
  %178 = vmatprep.subr.mxu0 0.0
  %179 = vmatpush1.msra.mxu0 %v149
  %180 = vmatprep.subr.mxu0 0.0
  %181 = vmatpush1.msra.mxu0 %v150
  %182 = vmatprep.subr.mxu0 0.0
  %183 = vmatpush1.msra.mxu0 %v151
  %184 = vmatprep.subr.mxu0 0.0
  %185 = vmatpush1.msra.mxu0 0.0
  %186 = vmatprep.subr.mxu0 0.0
  %187 = vmatpush1.msra.mxu0 0.0
  %188 = vmatprep.subr.mxu0 0.0
  %189 = vmatpush1.msra.mxu0 0.0
  %190 = vmatprep.subr.mxu0 0.0
  %191 = vmatpush1.msra.mxu0 0.0
  %192 = vmatprep.subr.mxu0 0.0
  %193 = vmatpush1.msra.mxu0 0.0
  %194 = vmatprep.subr.mxu0 0.0
  %195 = vmatpush1.msra.mxu0 0.0
  %196 = vmatprep.subr.mxu0 0.0
  %197 = vmatpush1.msra.mxu0 0.0
  %198 = vmatprep.subr.mxu0 0.0
  %199 = vmatpush1.msra.mxu0 0.0
  %200 = vmatprep.subr.mxu0 0.0
  %201 = vmatpush1.msra.mxu0 0.0
  %202 = vmatprep.subr.mxu0 0.0
  %203 = vmatpush1.msra.mxu0 0.0
  %204 = vmatprep.subr.mxu0 0.0
  %205 = vmatpush1.msra.mxu0 0.0
  %206 = vmatprep.subr.mxu0 0.0
  %207 = vmatpush1.msra.mxu0 0.0
  %208 = vmatprep.subr.mxu0 0.0
  %209 = vmatpush1.msra.mxu0 0.0
  %210 = vmatprep.subr.mxu0 0.0
  %211 = vmatpush1.msra.mxu0 0.0
  %212 = vmatprep.subr.mxu0 0.0
  %213 = vmatpush1.msra.mxu0 0.0
  %214 = vmatprep.subr.mxu0 0.0
  %215 = vmatpush1.msra.mxu0 0.0
  %216 = vmatprep.mubr.f32.mxu0 0.0
  %217 = vmatmul.mubr.f32.gmra.mrb[0].mxu0 %v132
  %v218 = vpop.f32.mrb[0].mxu0
  %v219 = vadd.f32 0.0, %v218
  %v220 = vpop.f32.mrb[0].mxu0
  %221 = vmatprep.mubr.f32.mxu0 0.0
  %222 = vmatmul.mubr.f32.gmra.mrb[0].mxu0 %v133
  %v223 = vpop.f32.mrb[0].mxu0
  %v224 = vadd.f32 0.0, %v223
  %v225 = vpop.f32.mrb[0].mxu0
  %226 = vdwg.mxu0
  %v227 = vadd.f32 %v134, %v219
  %v228 = vadd.f32 %v135, %v224
  %229 = vst [vmem:[#allocation2] sm:$0xff] %v227
  %230 = vst [vmem:[#allocation2 + $0x8] sm:$0xff] %v228
  // Predicated region
  $region34: #{decoder_forward.3} parent=0 // pred_check
    %p231 = pneg %p26
  $region35: #{decoder_forward.3} parent=0 // pred_check_branch
    %233 = sbr.rel (%p231) target = $region37
  $region36: #{decoder_forward.3} parent=0 // pred_region
    %v234 = vld [vmem:[#allocation2] sm:$0xff]
    %v235 = vld [vmem:[#allocation2 + $0x8] sm:$0xff]
    %v236 = vld [vmem:[%s4] sm:$0x1]
    %v238 = vlaneseq
    %v239 = vshrl.u32 %v238, 7
    %v240 = vsub.s32 0, %v239
    %v241 = vrot.slane %v236, %v240
    %v243 = vadd.f32 %v234, %v241
    %v244 = vadd.f32 %v235, %v241
    %v245 = vlaneseq
    %v246 = vand.u32 %v245, 127
    %vm247 = vcmp.lt.s32.totalorder %v246, 32
    %v248 = vsel %vm247, %v243, 0.0
    %v249 = vsel %vm247, %v244, 0.0
    %250 = vadd.xlane.f32.xlu0 %v248
    %v251 = vpop.xlane.xlu0 %250
    %252 = vadd.xlane.f32.xlu0 %v249
    %v253 = vpop.xlane.xlu0 %252
    %v254 = vrcp.pop 32.0
    %v255 = vmul.f32 %v251, %v254
    %v256 = vmul.f32 %v253, %v254
    %v257 = vsub.f32 %v243, %v255
    %v258 = vsub.f32 %v244, %v256
    %v259 = vsel %vm247, %v257, 0.0
    %v260 = vsel %vm247, %v258, 0.0
    %v261 = vmul.f32 %v259, %v259
    %v262 = vmul.f32 %v260, %v260
    %263 = vadd.xlane.f32.xlu0 %v261
    %v264 = vpop.xlane.xlu0 %263
    %265 = vadd.xlane.f32.xlu0 %v262
    %v266 = vpop.xlane.xlu0 %265
    %v267 = vrcp.pop 31.0
    %v268 = vmul.f32 %v264, %v267
    %v269 = vmul.f32 %v266, %v267
    %v270 = vrsqrt.pop %v268
    %v271 = vmul.f32 %v268, %v270
    %vm272 = vcmp.eq.f32.partialorder %v268, inf
    %v273 = vsel %vm272, %v268, %v271
    %vm274 = vcmp.eq.f32.partialorder %v268, 0.0
    %v275 = vand.u32 %v268, 2147483648
    %v276 = vsel %vm274, %v275, %v273
    %v277 = vrsqrt.pop %v269
    %v278 = vmul.f32 %v269, %v277
    %vm279 = vcmp.eq.f32.partialorder %v269, inf
    %v280 = vsel %vm279, %v269, %v278
    %vm281 = vcmp.eq.f32.partialorder %v269, 0.0
    %v282 = vand.u32 %v269, 2147483648
    %v283 = vsel %vm281, %v282, %v280
    %v284 = vld [vmem:[%s5] sm:$0x1]
    %v286 = vlaneseq
    %v287 = vshrl.u32 %v286, 7
    %v288 = vsub.s32 0, %v287
    %v289 = vrot.slane %v284, %v288
    %v291 = vmul.f32 %v289, %v259
    %v292 = vmul.f32 %v289, %v260
    %v293 = vadd.f32 %v276, 1e-06
    %v294 = vadd.f32 %v283, 1e-06
    %v295 = vrcp.pop %v293
    %v296 = vmul.f32 %v291, %v295
    %v297 = vrcp.pop %v294
    %v298 = vmul.f32 %v292, %v297
    %v299 = vld [vmem:[%s6] sm:$0x1]
    %v301 = vlaneseq
    %v302 = vshrl.u32 %v301, 7
    %v303 = vsub.s32 0, %v302
    %v304 = vrot.slane %v299, %v303
    %v306 = vadd.f32 %v296, %v304
    %v307 = vadd.f32 %v298, %v304
    %308 = vst [vmem:[%s7] sm:$0xff] %v306
    %309 = vst [vmem:[%s7 + $0x8] sm:$0xff] %v307
  $region37: #{decoder_forward.3} parent=0 // pred_fallthru
    _
  // Predicated region
  $region38: #{decoder_forward.3} parent=0 // pred_check
    _
  $region39: #{decoder_forward.3} parent=0 // pred_check_branch
    %311 = sbr.rel (0) target = $region41
  $region40: #{decoder_forward.3} parent=0 // pred_region
    _
  $region41: #{decoder_forward.3} parent=0 // pred_fallthru
    _
  // Predicated region
  $region42: #{decoder_forward.3} parent=0 // pred_check
    _
  $region43: #{decoder_forward.3} parent=0 // pred_check_branch
    %313 = sbr.rel (0) target = $region45
  $region44: #{decoder_forward.3} parent=0 // pred_region
    _
  $region45: #{decoder_forward.3} parent=0 // pred_fallthru
    _

</llo_original>
